<compile_context>
chip_gen: v5e
topology: v5e:2x2
jax: 0.10.0
libtpu: 0.0.40
codegen_flags: <defaults>
</compile_context>

<pallas_src>
import functools

import jax
import jax.numpy as jnp
from jax.experimental import pallas as pl
from jax.experimental.pallas import tpu as pltpu

LANE = 128             # lanes (block last dim)
MAX_BLOCK_ROWS = 1024  # rows per block: (1024, 128) f32 = 512 KiB per input block
NUM_PARALLEL = 2       # leading 'parallel' grid axis (2 TCs on v7x; no-op on v5e/v6e)


def _cdiv(a, b):
    return -(-a // b)


def _smooth_l1_partial_kernel(x_ref, y_ref, o_ref, *, beta, half_over_beta,
                              half_beta, block_rows, inner, rows_valid,
                              need_mask):
    """Accumulates per-parallel-slice, lane-resolved partial SmoothL1 sums.

    o_ref is a (1, 1, LANE) block whose index depends only on the parallel axis,
    so it stays resident in VMEM across the inner ('arbitrary') axis and acts as
    a vector accumulator (no per-iteration HBM store, no cross-lane reduce).
    """
    p = pl.program_id(0)
    i = pl.program_id(1)

    @pl.when(i == 0)
    def _():
        o_ref[...] = jnp.zeros((1, 1, LANE), jnp.float32)

    # Native-dtype DMA; cast to f32 in-kernel (v5e VPU has no bf16 path anyway).
    x = x_ref[...].astype(jnp.float32)
    y = y_ref[...].astype(jnp.float32)

    diff = x - y
    adiff = jnp.abs(diff)
    # SmoothL1 / Huber with beta:  0.5*d^2/beta  if |d| < beta  else |d| - 0.5*beta
    elem = jnp.where(adiff < beta, diff * diff * half_over_beta, adiff - half_beta)

    if need_mask:
        # Mask rows that fall beyond the real data (boundary-block garbage and
        # duplicated blocks produced by the clamped index_map).
        row = jax.lax.broadcasted_iota(jnp.int32, elem.shape, 0)
        global_row = (p * inner + i) * block_rows + row
        elem = jnp.where(global_row < rows_valid, elem, 0.0)

    # Sublane-only reduce (no cross-lane XLU work in the steady-state loop).
    partial = jnp.sum(elem, axis=0, keepdims=True)            # (1, LANE)
    o_ref[...] = o_ref[...] + partial.reshape(1, 1, LANE)


def consistency_loss_v2(coord, nocs, *, weight=1.0, beta=0.1):
    """weight * SmoothL1Loss(beta=beta, reduction='mean')(coord, nocs)."""
    assert coord.shape == nocs.shape, "coord and nocs must have identical shapes"
    n_elem = coord.size

    x = coord.reshape(-1)   # keep native dtype; cast happens in-kernel
    y = nocs.reshape(-1)

    # Pad only when the element count is not lane-aligned; zero padding
    # contributes exactly 0 to the SmoothL1 sum.
    # TODO(synk): a lane-misaligned size still forces a padded copy; a manual-DMA
    # 1-D path would avoid it, but n_elem % 128 == 0 is the common case.
    pad = (-n_elem) % LANE
    if pad:
        x = jnp.pad(x, (0, pad))
        y = jnp.pad(y, (0, pad))

    rows = (n_elem + pad) // LANE
    x = x.reshape(rows, LANE)
    y = y.reshape(rows, LANE)

    # Block row count: big (multiple of 8) for large inputs, or the full row
    # extent for small inputs (full-dim blocks are always legal).
    block_rows = MAX_BLOCK_ROWS if rows >= MAX_BLOCK_ROWS else rows
    nblocks = _cdiv(rows, block_rows)
    inner = _cdiv(nblocks, NUM_PARALLEL)
    covered_rows = NUM_PARALLEL * inner * block_rows
    need_mask = covered_rows != rows

    def in_map(p, i):
        # Clamp so the trailing slices of the parallel split never request a
        # fully out-of-bounds block; the in-kernel row mask zeroes the duplicates.
        return (jnp.minimum(p * inner + i, nblocks - 1), 0)

    kernel = functools.partial(
        _smooth_l1_partial_kernel,
        beta=float(beta),
        half_over_beta=0.5 / float(beta),
        half_beta=0.5 * float(beta),
        block_rows=block_rows,
        inner=inner,
        rows_valid=rows,
        need_mask=need_mask,
    )

    partials = pl.pallas_call(
        kernel,
        out_shape=jax.ShapeDtypeStruct((NUM_PARALLEL, 1, LANE), jnp.float32),
        grid_spec=pltpu.PrefetchScalarGridSpec(
            num_scalar_prefetch=0,
            grid=(NUM_PARALLEL, inner),
            in_specs=[
                pl.BlockSpec((block_rows, LANE), in_map),
                pl.BlockSpec((block_rows, LANE), in_map),
            ],
            out_specs=pl.BlockSpec((1, 1, LANE), lambda p, i: (p, 0, 0)),
        ),
        compiler_params=pltpu.CompilerParams(
            dimension_semantics=("parallel", "arbitrary"),
        ),
    )(x, y)

    total = jnp.sum(partials)  # tiny (2*128) lane reduction in the wrapper
    return jnp.float32(weight) * total / jnp.float32(n_elem)


def _reference(coord, nocs, weight=1.0, beta=0.1):
    diff = coord.astype(jnp.float32) - nocs.astype(jnp.float32)
    ad = jnp.abs(diff)
    elem = jnp.where(ad < beta, 0.5 * diff * diff / beta, ad - 0.5 * beta)
    return weight * jnp.mean(elem)


if __name__ == "__main__":
    key = jax.random.PRNGKey(0)
    k1, k2, k3, k4, k5, k6 = jax.random.split(key, 6)

    # 1) Primary small demo: point clouds of 3D coords (lane-aligned, single block).
    B, N = 2, 256
    coord = jax.random.normal(k1, (B, N, 3), dtype=jnp.float32)
    nocs = jax.random.normal(k2, (B, N, 3), dtype=jnp.float32)
    out = jax.block_until_ready(consistency_loss_v2(coord, nocs, weight=1.0, beta=0.1))
    ref = _reference(coord, nocs, weight=1.0, beta=0.1)
    assert jnp.allclose(out, ref, rtol=1e-4, atol=1e-6), (out, ref)

    # 2) Lane-misaligned size + non-trivial weight/beta (exercises mask + clamp path).
    coord2 = jax.random.normal(k3, (3, 700, 3), dtype=jnp.float32)
    nocs2 = jax.random.normal(k4, (3, 700, 3), dtype=jnp.float32)
    out2 = jax.block_until_ready(consistency_loss_v2(coord2, nocs2, weight=2.0, beta=0.25))
    ref2 = _reference(coord2, nocs2, weight=2.0, beta=0.25)
    assert jnp.allclose(out2, ref2, rtol=1e-4, atol=1e-6), (out2, ref2)

    # 3) Multi-block case (rows > MAX_BLOCK_ROWS): exercises big tiles + parallel split.
    coord3 = jax.random.normal(k5, (2, 45000, 3), dtype=jnp.float32)
    nocs3 = jax.random.normal(k6, (2, 45000, 3), dtype=jnp.float32)
    out3 = jax.block_until_ready(consistency_loss_v2(coord3, nocs3, weight=1.0, beta=0.1))
    ref3 = _reference(coord3, nocs3, weight=1.0, beta=0.1)
    assert jnp.allclose(out3, ref3, rtol=1e-4, atol=1e-6), (out3, ref3)

    print("KERNEL_OK")
</pallas_src>

<mosaic_0001>
module attributes {stable_mosaic.version = 11 : i64} {
  func.func @_smooth_l1_partial_kernel(%arg0: i32, %arg1: i32, %arg2: memref<12x128xf32, #tpu.memory_space<vmem>>, %arg3: memref<12x128xf32, #tpu.memory_space<vmem>>, %arg4: memref<1x1x128xf32, #tpu.memory_space<vmem>>) attributes {dimension_semantics = [#tpu.dimension_semantics<parallel>, #tpu.dimension_semantics<arbitrary>], iteration_bounds = array<i64: 2, 1>, scalar_prefetch = 0 : i64, scratch_operands = 0 : i64, tpu.core_type = #tpu.core_type<tc>, window_params = [{transform_indices = @transform_0, window_bounds = array<i64: 12, 128>}, {transform_indices = @transform_1, window_bounds = array<i64: 12, 128>}, {transform_indices = @transform_2, window_bounds = array<i64: 1, 1, 128>}]} {
    %c0_i32 = arith.constant 0 : i32
    %0 = arith.cmpi eq, %arg1, %c0_i32 : i32
    %1 = arith.extui %0 : i1 to i32
    %c0_i32_0 = arith.constant 0 : i32
    %2 = arith.cmpi ne, %1, %c0_i32_0 : i32
    scf.if %2 {
      %cst_15 = arith.constant 0.000000e+00 : f32
      %31 = vector.broadcast %cst_15 : f32 to vector<1x1x128xf32>
      %c0_16 = arith.constant 0 : index
      %c0_17 = arith.constant 0 : index
      %c0_18 = arith.constant 0 : index
      %32 = vector.load %arg4[%c0_16, %c0_17, %c0_18] : memref<1x1x128xf32, #tpu.memory_space<vmem>>, vector<1x1x128xf32>
      tpu.vector_store %arg4[%c0_16, %c0_17, %c0_18], %31 {strides = array<i32>} : memref<1x1x128xf32, #tpu.memory_space<vmem>>, vector<1x1x128xf32>,
    } else {
    }
    %c0 = arith.constant 0 : index
    %c0_1 = arith.constant 0 : index
    %3 = vector.load %arg2[%c0, %c0_1] : memref<12x128xf32, #tpu.memory_space<vmem>>, vector<12x128xf32>
    %c0_2 = arith.constant 0 : index
    %c0_3 = arith.constant 0 : index
    %4 = vector.load %arg3[%c0_2, %c0_3] : memref<12x128xf32, #tpu.memory_space<vmem>>, vector<12x128xf32>
    %5 = arith.subf %3, %4 : vector<12x128xf32>
    %6 = math.absf %5 : vector<12x128xf32>
    %cst = arith.constant 1.000000e-01 : f32
    %7 = vector.broadcast %cst : f32 to vector<12x128xf32>
    %8 = arith.cmpf olt, %6, %7 : vector<12x128xf32>
    %9 = arith.mulf %5, %5 : vector<12x128xf32>
    %cst_4 = arith.constant 5.000000e+00 : f32
    %10 = vector.broadcast %cst_4 : f32 to vector<12x128xf32>
    %11 = arith.mulf %9, %10 : vector<12x128xf32>
    %cst_5 = arith.constant 5.000000e-02 : f32
    %12 = vector.broadcast %cst_5 : f32 to vector<12x128xf32>
    %13 = arith.subf %6, %12 : vector<12x128xf32>
    %14 = arith.select %8, %11, %13 : vector<12x128xi1>, vector<12x128xf32>
    %15 = tpu.iota {dimensions = array<i32: 0>} : vector<12x128xi32>
    %c1_i32 = arith.constant 1 : i32
    %16 = arith.muli %arg0, %c1_i32 : i32
    %17 = arith.addi %16, %arg1 : i32
    %c12_i32 = arith.constant 12 : i32
    %18 = arith.muli %17, %c12_i32 : i32
    %19 = vector.broadcast %18 : i32 to vector<12x128xi32>
    %20 = arith.addi %19, %15 : vector<12x128xi32>
    %c12_i32_6 = arith.constant 12 : i32
    %21 = vector.broadcast %c12_i32_6 : i32 to vector<12x128xi32>
    %22 = arith.cmpi slt, %20, %21 : vector<12x128xi32>
    %cst_7 = arith.constant 0.000000e+00 : f32
    %23 = vector.broadcast %cst_7 : f32 to vector<12x128xf32>
    %24 = arith.select %22, %14, %23 : vector<12x128xi1>, vector<12x128xf32>
    %cst_8 = arith.constant dense<0.000000e+00> : vector<128xf32>
    %25 = vector.multi_reduction <add>, %24, %cst_8 [0] : vector<12x128xf32> to vector<128xf32>
    %26 = vector.shape_cast %25 : vector<128xf32> to vector<1x128xf32>
    %c0_9 = arith.constant 0 : index
    %c0_10 = arith.constant 0 : index
    %c0_11 = arith.constant 0 : index
    %27 = vector.load %arg4[%c0_9, %c0_10, %c0_11] : memref<1x1x128xf32, #tpu.memory_space<vmem>>, vector<1x1x128xf32>
    %28 = vector.shape_cast %26 : vector<1x128xf32> to vector<1x1x128xf32>
    %29 = arith.addf %27, %28 : vector<1x1x128xf32>
    %c0_12 = arith.constant 0 : index
    %c0_13 = arith.constant 0 : index
    %c0_14 = arith.constant 0 : index
    %30 = vector.load %arg4[%c0_12, %c0_13, %c0_14] : memref<1x1x128xf32, #tpu.memory_space<vmem>>, vector<1x1x128xf32>
    tpu.vector_store %arg4[%c0_12, %c0_13, %c0_14], %29 {strides = array<i32>} : memref<1x1x128xf32, #tpu.memory_space<vmem>>, vector<1x1x128xf32>,
    return
  }
  func.func @transform_0(%arg0: i32, %arg1: i32) -> (i32, i32) {
    %c1_i32 = arith.constant 1 : i32
    %0 = arith.muli %arg0, %c1_i32 : i32
    %1 = arith.addi %0, %arg1 : i32
    %c0_i32 = arith.constant 0 : i32
    %2 = arith.minsi %1, %c0_i32 : i32
    %c0_i32_0 = arith.constant 0 : i32
    %c0_i32_1 = arith.constant 0 : i32
    return %2, %c0_i32_0 : i32, i32
  }
  func.func @transform_1(%arg0: i32, %arg1: i32) -> (i32, i32) {
    %c1_i32 = arith.constant 1 : i32
    %0 = arith.muli %arg0, %c1_i32 : i32
    %1 = arith.addi %0, %arg1 : i32
    %c0_i32 = arith.constant 0 : i32
    %2 = arith.minsi %1, %c0_i32 : i32
    %c0_i32_0 = arith.constant 0 : i32
    %c0_i32_1 = arith.constant 0 : i32
    return %2, %c0_i32_0 : i32, i32
  }
  func.func @transform_2(%arg0: i32, %arg1: i32) -> (i32, i32, i32) {
    %c0_i32 = arith.constant 0 : i32
    %c0_i32_0 = arith.constant 0 : i32
    %c0_i32_1 = arith.constant 0 : i32
    return %arg0, %c0_i32, %c0_i32_0 : i32, i32, i32
  }
}

</mosaic_0001>

<llo_original>
// kernel: tpu_custom_call.1
$region0: #{tpu_custom_call.1}
  #allocation0 [shape = 'u32[]', space=smem, size = 0x4, offset = 0x4, fixed_abs, tag = 'smem constant byte address 0x4 - core index']
  #allocation1 [shape = 'u32[72,128]{1,0:T(1,128)}', space=vmem, size = 0x9000, scoped, tag = 'internal scratch']
  %s0 = inlined_call_operand.hbm [shape: f32[12,128], index: 0, kind: input, shape index: {}]
  %s1 = inlined_call_operand.hbm [shape: f32[12,128], index: 1, kind: input, shape index: {}]
  %s2 = inlined_call_operand.hbm [shape: f32[2,1,128], index: 2, kind: output, shape index: {}]
  %s3 = sld [smem:[#allocation0]]
  $region53: #{tpu_custom_call.1} parent=0
    _
  %s5 = ssub.s32 1, %s3
  %s6 = scalar_select 0, %s5, %s3
  $region1: #{tpu_custom_call.1} parent=0
    #allocation2 [shape = 'u8[16384]{0}', space=vmem, size = 0x4000, scoped, tag = 'input window, operand 0']
    #allocation3 [shape = 's32[2]{0}', space=sflag, size = 0x8, scoped, tag = 'scoped memory for tpu_custom_call.1']
    #allocation4 [shape = 's32[2]{0}', space=sflag, size = 0x8, scoped, tag = 'scoped memory for tpu_custom_call.1']
    #allocation5 [shape = 'u8[16384]{0}', space=vmem, size = 0x4000, scoped, tag = 'input window, operand 1']
    #allocation6 [shape = 's32[2]{0}', space=sflag, size = 0x8, scoped, tag = 'scoped memory for tpu_custom_call.1']
    #allocation7 [shape = 'u8[1024]{0}', space=vmem, size = 0x400, scoped, tag = 'output window, operand 0']
    %7 = vsyncpa [#allocation3], 0
    %s8 = scalar_lea.sflag [#allocation3], 1
    %9 = vsyncpa %s8, 0
    %10 = vsyncpa [#allocation6], 0
    %s11 = scalar_lea.sflag [#allocation6], 1
    %12 = vsyncpa %s11, 0
    %13 = vsyncpa [#allocation4], 0
    %s14 = scalar_lea.sflag [#allocation4], 1
    %15 = vsyncpa %s14, 0
    loop: start=0, step=1, limit=4
    $region2: #{tpu_custom_call.1} parent=1 // loop_pre_header
      _
    $region3: #{tpu_custom_call.1} parent=1 // loop_header
      %s17 = sphi 0, %s21
      %p18 = scmp.ge.s32.totalorder %s17, 4
      %s24 = sphi 0, %s36
      %s25 = sphi 0, %s32
      %s26 = sphi 0, %s24
      %s27 = sphi 0, %s25
      %s28 = sphi 0, %s26
      %s29 = sphi 0, %s27
      %s45 = sphi 0, %s47
      %s48 = sphi 0, %s45
      %s49 = sphi 0, %s48
      %s65 = sphi 0, %s49
      %s77 = sphi 0, %s79
      %s80 = sphi 0, %s77
      %s81 = sphi 0, %s80
      %s97 = sphi 0, %s81
      %s103 = sphi 0, %s105
      %s106 = sphi 0, %s103
      %s107 = sphi 0, %s106
      %s123 = sphi 0, %s107
    $region4: #{tpu_custom_call.1} parent=1 // loop_header_branch
      %20 = sbr.rel (%p18) target = $region8
    $region5: #{tpu_custom_call.1} parent=1 // loop_body
      %s22 = ssub.s32 %s17, 1
      %s23 = ssub.s32 %s17, 2
      %s30 = sadd.s32 1, %s25
      %p31 = scmp.ge.s32.totalorder %s30, 1
      %s32 = scalar_select %p31, 0, %s30
      %s33 = sadd.s32 1, %s24
      %s34 = scalar_select %p31, %s33, %s24
      %p35 = scmp.ge.s32.totalorder %s34, 2
      %s36 = scalar_select %p35, 0, %s34
      %s37 = sadd.s32 %s24, %s25
      %p38 = scmp.lt.s32.totalorder %s37, 0
      %s39 = scalar_select %p38, %s37, 0
      %s40 = sadd.s32 %s36, %s32
      %p41 = scmp.lt.s32.totalorder %s40, 0
      %s42 = scalar_select %p41, %s40, 0
      %s43 = ssub.s32 %s39, %s42
      %p44 = scmp.eq.s32.totalorder %s43, 0
      %s46 = sadd.s32 %s45, 1
      %s47 = scalar_select %p44, %s45, %s46
      %p50 = pneg %p44
      %p51 = scmp.eq.s32.totalorder %s17, 1
      %p52 = por %p50, %p51
      %p53 = scmp.ne.s32.totalorder %s45, %s48
      %p54 = scmp.eq.s32.totalorder %s17, 0
      %p55 = por %p53, %p54
      %p56 = scmp.ne.s32.totalorder %s45, %s48
      %p57 = scmp.eq.s32.totalorder %s22, 1
      %p58 = por %p56, %p57
      %p59 = scmp.ne.s32.totalorder %s48, %s49
      %p60 = scmp.eq.s32.totalorder %s22, 0
      %p61 = por %p59, %p60
      %p62 = scmp.ne.s32.totalorder %s48, %s49
      %p63 = scmp.eq.s32.totalorder %s23, 1
      %p64 = por %p62, %p63
      %p66 = scmp.ne.s32.totalorder %s49, %s65
      %p67 = scmp.eq.s32.totalorder %s23, 0
      %p68 = por %p66, %p67
      %s69 = sadd.s32 %s24, %s25
      %p70 = scmp.lt.s32.totalorder %s69, 0
      %s71 = scalar_select %p70, %s69, 0
      %s72 = sadd.s32 %s36, %s32
      %p73 = scmp.lt.s32.totalorder %s72, 0
      %s74 = scalar_select %p73, %s72, 0
      %s75 = ssub.s32 %s71, %s74
      %p76 = scmp.eq.s32.totalorder %s75, 0
      %s78 = sadd.s32 %s77, 1
      %s79 = scalar_select %p76, %s77, %s78
      %p82 = pneg %p76
      %p83 = scmp.eq.s32.totalorder %s17, 1
      %p84 = por %p82, %p83
      %p85 = scmp.ne.s32.totalorder %s77, %s80
      %p86 = scmp.eq.s32.totalorder %s17, 0
      %p87 = por %p85, %p86
      %p88 = scmp.ne.s32.totalorder %s77, %s80
      %p89 = scmp.eq.s32.totalorder %s22, 1
      %p90 = por %p88, %p89
      %p91 = scmp.ne.s32.totalorder %s80, %s81
      %p92 = scmp.eq.s32.totalorder %s22, 0
      %p93 = por %p91, %p92
      %p94 = scmp.ne.s32.totalorder %s80, %s81
      %p95 = scmp.eq.s32.totalorder %s23, 1
      %p96 = por %p94, %p95
      %p98 = scmp.ne.s32.totalorder %s81, %s97
      %p99 = scmp.eq.s32.totalorder %s23, 0
      %p100 = por %p98, %p99
      %s101 = ssub.s32 %s24, %s36
      %p102 = scmp.eq.s32.totalorder %s101, 0
      %s104 = sadd.s32 %s103, 1
      %s105 = scalar_select %p102, %s103, %s104
      %p108 = pneg %p102
      %p109 = scmp.eq.s32.totalorder %s17, 1
      %p110 = por %p108, %p109
      %p111 = scmp.ne.s32.totalorder %s103, %s106
      %p112 = scmp.eq.s32.totalorder %s17, 0
      %p113 = por %p111, %p112
      %p114 = scmp.ne.s32.totalorder %s103, %s106
      %p115 = scmp.eq.s32.totalorder %s22, 1
      %p116 = por %p114, %p115
      %p117 = scmp.ne.s32.totalorder %s106, %s107
      %p118 = scmp.eq.s32.totalorder %s22, 0
      %p119 = por %p117, %p118
      %p120 = scmp.ne.s32.totalorder %s106, %s107
      %p121 = scmp.eq.s32.totalorder %s23, 1
      %p122 = por %p120, %p121
      %p124 = scmp.ne.s32.totalorder %s107, %s123
      %p125 = scmp.eq.s32.totalorder %s23, 0
      %p126 = por %p124, %p125
      %p127 = scmp.le.s32.totalorder 1, %s17
      %p128 = scmp.lt.s32.totalorder %s17, 3
      %p129 = pnand %p127, %p128
      %p130 = pneg %p129
      // Predicated region
      $region9: #{tpu_custom_call.1} parent=5 // pred_check
        _
      $region10: #{tpu_custom_call.1} parent=5 // pred_check_branch
        %132 = sbr.rel (%p129) target = $region12
      $region11: #{tpu_custom_call.1} parent=5 // pred_region
        %s133 = ssub.s32 %s17, 1
      $region12: #{tpu_custom_call.1} parent=5 // pred_fallthru
        _
      %p134 = scmp.lt.s32.totalorder %s17, 2
      // Predicated region
      $region13: #{tpu_custom_call.1} parent=5 // pred_check
        %p135 = pneg %p134
      $region14: #{tpu_custom_call.1} parent=5 // pred_check_branch
        %137 = sbr.rel (%p135) target = $region16
      $region15: #{tpu_custom_call.1} parent=5 // pred_region
        // Predicated region
        $region17: #{tpu_custom_call.1} parent=15 // pred_check
          %p138 = pneg %p55
        $region18: #{tpu_custom_call.1} parent=15 // pred_check_branch
          %140 = sbr.rel (%p138) target = $region20
        $region19: #{tpu_custom_call.1} parent=15 // pred_region
          %s141 = sand.u32 %s45, 1
          %s142 = scalar_lea.sflag [#allocation3], %s141
          %s143 = sand.u32 %s45, 1
          %s144 = smul.addr %s143, 16
          %s145 = scalar_lea.vmem [#allocation2], %s144
          %s146 = sadd.s32 %s24, %s25
          %p147 = scmp.lt.s32.totalorder %s146, 0
          %s148 = scalar_select %p147, %s146, 0
          %s149 = smul.u32 2, %s148
          %151 = vsyncadd %s142, 0
          %s152 = smul.addr %s149, 8
          %s153 = scalar_lea.hbm %s0, %s152
          %s154 = sshll.u32 %s153, 4
          %s155 = int_to_ptr.hbm [resolvable:$true] %s154
          %s156 = sshll.u32 %s145, 4
          %s157 = int_to_ptr.vmem [resolvable:$true] %s156
          %162 = dma.hbm_to_vmem [thread:$0]  %s155, 256, %s157, %s142, 128, 128, 8
        $region20: #{tpu_custom_call.1} parent=15 // pred_fallthru
          _
        // Predicated region
        $region21: #{tpu_custom_call.1} parent=15 // pred_check
          %p163 = pneg %p87
        $region22: #{tpu_custom_call.1} parent=15 // pred_check_branch
          %165 = sbr.rel (%p163) target = $region24
        $region23: #{tpu_custom_call.1} parent=15 // pred_region
          %s166 = sand.u32 %s77, 1
          %s167 = scalar_lea.sflag [#allocation6], %s166
          %s168 = sand.u32 %s77, 1
          %s169 = smul.addr %s168, 16
          %s170 = scalar_lea.vmem [#allocation5], %s169
          %s171 = sadd.s32 %s24, %s25
          %p172 = scmp.lt.s32.totalorder %s171, 0
          %s173 = scalar_select %p172, %s171, 0
          %s174 = smul.u32 2, %s173
          %176 = vsyncadd %s167, 0
          %s177 = smul.addr %s174, 8
          %s178 = scalar_lea.hbm %s1, %s177
          %s179 = sshll.u32 %s178, 4
          %s180 = int_to_ptr.hbm [resolvable:$true] %s179
          %s181 = sshll.u32 %s170, 4
          %s182 = int_to_ptr.vmem [resolvable:$true] %s181
          %187 = dma.hbm_to_vmem [thread:$0]  %s180, 256, %s182, %s167, 128, 128, 8
        $region24: #{tpu_custom_call.1} parent=15 // pred_fallthru
          _
      $region16: #{tpu_custom_call.1} parent=5 // pred_fallthru
        _
      %p188 = scmp.le.s32.totalorder 1, %s17
      %p189 = scmp.lt.s32.totalorder %s17, 3
      %p190 = pnand %p188, %p189
      %p191 = pneg %p190
      // Predicated region
      $region25: #{tpu_custom_call.1} parent=5 // pred_check
        _
      $region26: #{tpu_custom_call.1} parent=5 // pred_check_branch
        %193 = sbr.rel (%p190) target = $region28
      $region27: #{tpu_custom_call.1} parent=5 // pred_region
        %s194 = ssub.s32 %s17, 1
        %s195 = sand.u32 %s48, 1
        %s196 = scalar_lea.sflag [#allocation3], %s195
        %s197 = sand.u32 %s48, 1
        %s198 = smul.addr %s197, 16
        %s199 = scalar_lea.vmem [#allocation2], %s198
        // Predicated region
        $region29: #{tpu_custom_call.1} parent=27 // pred_check
          %p200 = pneg %p61
        $region30: #{tpu_custom_call.1} parent=27 // pred_check_branch
          %202 = sbr.rel (%p200) target = $region32
        $region31: #{tpu_custom_call.1} parent=27 // pred_region
          %204 = dma.done %s196, 256
        $region32: #{tpu_custom_call.1} parent=27 // pred_fallthru
          _
        %s205 = sand.u32 %s80, 1
        %s206 = scalar_lea.sflag [#allocation6], %s205
        %s207 = sand.u32 %s80, 1
        %s208 = smul.addr %s207, 16
        %s209 = scalar_lea.vmem [#allocation5], %s208
        // Predicated region
        $region33: #{tpu_custom_call.1} parent=27 // pred_check
          %p210 = pneg %p93
        $region34: #{tpu_custom_call.1} parent=27 // pred_check_branch
          %212 = sbr.rel (%p210) target = $region36
        $region35: #{tpu_custom_call.1} parent=27 // pred_region
          %214 = dma.done %s206, 256
        $region36: #{tpu_custom_call.1} parent=27 // pred_fallthru
          _
        %s215 = sand.u32 %s48, 1
        %s216 = scalar_lea.sflag [#allocation3], %s215
        %s217 = sand.u32 %s48, 1
        %s218 = smul.addr %s217, 16
        %s219 = scalar_lea.vmem [#allocation2], %s218
        %p220 = pneg %p61
        %p221 = pneg %p58
        %s222 = sand.u32 %s80, 1
        %s223 = scalar_lea.sflag [#allocation6], %s222
        %s224 = sand.u32 %s80, 1
        %s225 = smul.addr %s224, 16
        %s226 = scalar_lea.vmem [#allocation5], %s225
        %p227 = pneg %p93
        %p228 = pneg %p90
        %p229 = pneg %p119
        %p230 = pneg %p116
        %s231 = sand.u32 %s106, 1
        %s232 = scalar_lea.sflag [#allocation4], %s231
        %s233 = sand.u32 %s106, 1
        %s234 = scalar_lea.vmem [#allocation7], %s233
        %s235 = sadd.s32 %s26, %s27
        %p236 = scmp.lt.s32.totalorder %s235, 0
        %s237 = scalar_select %p236, %s235, 0
        %s238 = smul.u32 2, %s237
        %s239 = sadd.s32 %s26, %s27
        %p240 = scmp.lt.s32.totalorder %s239, 0
        %s241 = scalar_select %p240, %s239, 0
        %s242 = smul.u32 2, %s241
        %p243 = scmp.eq.s32.totalorder %s27, 0
        // Predicated region
        $region37: #{tpu_custom_call.1} parent=27 // pred_check
          %p244 = pneg %p243
        $region38: #{tpu_custom_call.1} parent=27 // pred_check_branch
          %246 = sbr.rel (%p244) target = $region40
        $region39: #{tpu_custom_call.1} parent=27 // pred_region
          %247 = vst [vmem:[%s234] sm:$0x1] 0.0
        $region40: #{tpu_custom_call.1} parent=27 // pred_fallthru
          _
        %v248 = vld [vmem:[%s199] sm:$0xff]
        %v249 = vld [vmem:[%s199 + $0x8] sm:$0xf]
        %v250 = vld [vmem:[%s209] sm:$0xff]
        %v251 = vld [vmem:[%s209 + $0x8] sm:$0xf]
        %v252 = vsub.f32 %v248, %v250
        %v253 = vsub.f32 %v249, %v251
        %v254 = vand.u32 2147483647, %v252
        %v255 = vand.u32 2147483647, %v253
        %vm256 = vcmp.lt.f32.partialorder %v254, 0.1
        %vm257 = vcmp.lt.f32.partialorder %v255, 0.1
        %v258 = vmul.f32 %v252, %v252
        %v259 = vmul.f32 %v253, %v253
        %v260 = vmul.f32 %v258, 5.0
        %v261 = vmul.f32 %v259, 5.0
        %v262 = vsub.f32 %v254, 0.05
        %v263 = vsub.f32 %v255, 0.05
        %v264 = vsel %vm256, %v260, %v262
        %v265 = vsel %vm257, %v261, %v263
        %v266 = vlaneseq
        %v267 = vshrl.u32 %v266, 7
        %v268 = vadd.s32 %v267, 8
        %s269 = sadd.s32 %s26, %s27
        %s270 = smul.u32 %s269, 12
        %v271 = vstv %s270
        %v272 = vadd.s32 %v271, %v267
        %v273 = vadd.s32 %v271, %v268
        %vm274 = vcmp.lt.s32.totalorder %v272, 12
        %vm275 = vcmp.lt.s32.totalorder %v273, 12
        %v276 = vsel %vm274, %v264, 0.0
        %v277 = vsel %vm275, %v265, 0.0
        %vm278 = vcmask 1043456
        %v279 = vsel %vm278, %v277, 0.0
        %v280 = vadd.f32 %v276, %v279
        %v281 = vrot.slane %v280, 4
        %v282 = vadd.f32 %v280, %v281
        %v283 = vrot.slane %v282, 2
        %v284 = vadd.f32 %v282, %v283
        %v285 = vrot.slane %v284, 1
        %v286 = vadd.f32 %v284, %v285
        %v287 = vld [vmem:[%s234] sm:$0x1]
        %v288 = vadd.f32 %v287, %v286
        %289 = vst [vmem:[%s234] sm:$0x1] %v288
        %s290 = sand.u32 %s106, 1
        %s291 = scalar_lea.sflag [#allocation4], %s290
        %s292 = sand.u32 %s106, 1
        %s293 = scalar_lea.vmem [#allocation7], %s292
        // Predicated region
        $region41: #{tpu_custom_call.1} parent=27 // pred_check
          %p294 = pneg %p116
        $region42: #{tpu_custom_call.1} parent=27 // pred_check_branch
          %296 = sbr.rel (%p294) target = $region44
        $region43: #{tpu_custom_call.1} parent=27 // pred_region
          %298 = vsyncadd %s291, 0
          %s299 = scalar_lea.hbm %s2, %s26
          %s301 = sshll.u32 %s293, 4
          %s302 = int_to_ptr.vmem [resolvable:$true] %s301
          %s303 = sshll.u32 %s299, 4
          %s304 = int_to_ptr.hbm [resolvable:$true] %s303
          %306 = dma.vmem_to_hbm [thread:$0]  %s302, 16, %s304, %s291
        $region44: #{tpu_custom_call.1} parent=27 // pred_fallthru
          _
      $region28: #{tpu_custom_call.1} parent=5 // pred_fallthru
        _
      %p307 = scmp.le.s32.totalorder 2, %s17
      // Predicated region
      $region45: #{tpu_custom_call.1} parent=5 // pred_check
        %p308 = pneg %p307
      $region46: #{tpu_custom_call.1} parent=5 // pred_check_branch
        %310 = sbr.rel (%p308) target = $region48
      $region47: #{tpu_custom_call.1} parent=5 // pred_region
        %s311 = ssub.s32 %s17, 2
        // Predicated region
        $region49: #{tpu_custom_call.1} parent=47 // pred_check
          %p312 = pneg %p122
        $region50: #{tpu_custom_call.1} parent=47 // pred_check_branch
          %314 = sbr.rel (%p312) target = $region52
        $region51: #{tpu_custom_call.1} parent=47 // pred_region
          %s315 = sand.u32 %s107, 1
          %s316 = scalar_lea.sflag [#allocation4], %s315
          %s317 = sand.u32 %s107, 1
          %s318 = scalar_lea.vmem [#allocation7], %s317
          %320 = dma.done %s316, 16
        $region52: #{tpu_custom_call.1} parent=47 // pred_fallthru
          _
      $region48: #{tpu_custom_call.1} parent=5 // pred_fallthru
        _
    $region6: #{tpu_custom_call.1} parent=1 // loop_footer
      %s21 = sadd.s32 1, %s17
    $region7: #{tpu_custom_call.1} parent=1 // loop_footer_branch
      %16 = sbr.rel target = $region3
    $region8: #{tpu_custom_call.1} parent=1 // loop_exit
      _
    %321 = vsyncpa [#allocation3], 1
    %s322 = scalar_lea.sflag [#allocation3], 1
    %323 = vsyncpa %s322, 1
    %324 = vsyncpa [#allocation6], 1
    %s325 = scalar_lea.sflag [#allocation6], 1
    %326 = vsyncpa %s325, 1
    %327 = vsyncpa [#allocation4], 1
    %s328 = scalar_lea.sflag [#allocation4], 1
    %329 = vsyncpa %s328, 1

</llo_original>
